<compile_context>
chip_gen: v6e
topology: v6e:2x2x1
jax: 0.10.0
libtpu: 0.0.40
codegen_flags: <defaults>
</compile_context>

<pallas_src>
import functools
import math

import jax
import jax.numpy as jnp
from jax import lax
from jax.experimental import pallas as pl
from jax.experimental.pallas import tpu as pltpu

_HALO_LANES = 128          # lane width of the streamed halo blocks
_K = 3                     # DoubleConv kernel size (padding=1, 'same')


def _pool_rows(rows_cl, n_out, scale):
    """(n_out*scale, C) channels-last raw rows -> (n_out, C) max-pooled rows."""
    if scale == 1:
        return rows_cl
    c = rows_cl.shape[-1]
    return jnp.max(rows_cl.reshape(n_out, scale, c), axis=1)


def _double_conv_tile(p_win, q0, lo, tl, w1_ref, w2_ref, b1_ref, b2_ref, o_ref):
    """conv3 -> shift -> ReLU twice on one pooled window; store a (Cout, tl) tile.

    p_win : (tl + 4, Cin) f32 pooled rows covering pooled idx [q0-2, q0+tl+2).
    q0    : global pooled index of the first output row of this tile.
    """
    mid = tl + 2
    # Pooled rows outside [0, lo) are conv1's zero padding (this also squashes
    # any OOB/ragged-block garbage picked up at the sequence boundaries).
    rowp = lax.broadcasted_iota(jnp.int32, (tl + 4, 1), 0) + (q0 - 2)
    p_win = jnp.where((rowp >= 0) & (rowp < lo), p_win, 0.0)
    p_bf = p_win.astype(jnp.bfloat16)

    # conv1 ('same', k=3) as a single im2col matmul: (mid, 3*Cin) @ (3*Cin, Cmid)
    pcat = jnp.concatenate([p_bf[0:mid], p_bf[1:mid + 1], p_bf[2:mid + 2]], axis=1)
    a1 = jnp.dot(pcat, w1_ref[...], preferred_element_type=jnp.float32)
    a1 = jnp.maximum(a1 + b1_ref[...], 0.0)

    # Mid rows outside [0, lo) are conv2's zero padding, not real activations.
    rowm = lax.broadcasted_iota(jnp.int32, (mid, 1), 0) + (q0 - 1)
    a1 = jnp.where((rowm >= 0) & (rowm < lo), a1, 0.0)
    a1 = a1.astype(jnp.bfloat16)

    # conv2 ('same', k=3) as a single im2col matmul: (tl, 3*Cmid) @ (3*Cmid, Cout)
    mcat = jnp.concatenate([a1[0:tl], a1[1:tl + 1], a1[2:tl + 2]], axis=1)
    y = jnp.dot(mcat, w2_ref[...], preferred_element_type=jnp.float32)
    y = jnp.maximum(y + b2_ref[...], 0.0)

    # Channel-first store: lane axis = length axis (lane-dense for tl >= 128).
    o_ref[0] = y.T.astype(o_ref.dtype)


def _make_multi_tile_kernel(scale, tl, lo):
    h = 2 * scale

    def kernel(xc_ref, xl_ref, xr_ref, w1_ref, w2_ref, b1_ref, b2_ref, o_ref):
        j = pl.program_id(0)
        q0 = j * tl
        # Streamed center block: (Cin, tl*scale) -> channels-last -> pooled.
        pc = _pool_rows(xc_ref[0].T, tl, scale)                           # (tl, Cin)
        # Left halo = last 2*scale lanes of the preceding 128-lane block.
        lh = _pool_rows(xl_ref[0][:, _HALO_LANES - h:].T, 2, scale)       # (2, Cin)
        # Right halo = first 2*scale lanes of the following 128-lane block.
        rh = _pool_rows(xr_ref[0][:, :h].T, 2, scale)                     # (2, Cin)
        p_win = jnp.concatenate([lh, pc, rh], axis=0)                     # (tl+4, Cin)
        _double_conv_tile(p_win, q0, lo, tl,
                          w1_ref, w2_ref, b1_ref, b2_ref, o_ref)

    return kernel


def _make_single_tile_kernel(scale, lo):
    def kernel(x_ref, w1_ref, w2_ref, b1_ref, b2_ref, o_ref):
        cin = x_ref.shape[1]
        raw = x_ref[0][:, :lo * scale].T                                  # (lo*scale, Cin)
        pc = _pool_rows(raw, lo, scale)                                   # (lo, Cin)
        zeros = jnp.zeros((2, cin), pc.dtype)
        p_win = jnp.concatenate([zeros, pc, zeros], axis=0)               # (lo+4, Cin)
        _double_conv_tile(p_win, 0, lo, lo,
                          w1_ref, w2_ref, b1_ref, b2_ref, o_ref)

    return kernel


def down_forward(x, params, *, scale, tile_l=512):
    """Down.forward: x (B, Cin, L) f32 -> (B, Cout, L // scale) f32 (NCW)."""
    B, cin, L = x.shape
    assert L >= scale, (L, scale)
    assert 2 * scale <= _HALO_LANES, scale
    lo = L // scale
    w1, w2 = params["w1"], params["w2"]            # (3, Cin, Cmid), (3, Cmid, Cout)
    cmid, cout = w1.shape[-1], w2.shape[-1]

    # Fold inference-mode BatchNorm1d into the conv weights (scale) + a shift.
    eps = 1e-5
    s1 = params["bn1_gamma"] * lax.rsqrt(params["bn1_var"] + eps)
    b1 = params["bn1_beta"] - params["bn1_mean"] * s1
    s2 = params["bn2_gamma"] * lax.rsqrt(params["bn2_var"] + eps)
    b2 = params["bn2_beta"] - params["bn2_mean"] * s2
    w1cat = (w1.reshape(_K * cin, cmid) * s1[None, :]).astype(jnp.bfloat16)
    w2cat = (w2.reshape(_K * cmid, cout) * s2[None, :]).astype(jnp.bfloat16)
    b1r = b1.reshape(1, cmid).astype(jnp.float32)
    b2r = b2.reshape(1, cout).astype(jnp.float32)

    x = x.astype(jnp.float32)
    out_shape = jax.ShapeDtypeStruct((B, cout, lo), jnp.float32)

    tl = max(_HALO_LANES, (tile_l // _HALO_LANES) * _HALO_LANES)
    if lo > tl:
        # Multi-tile path: stream tl*scale raw lanes (+ two 128-lane halo
        # blocks) per grid step; ragged last tile handled by masking/clipping.
        n_tiles = -(-lo // tl)
        bpt = (tl * scale) // _HALO_LANES        # 128-lane blocks per L tile
        last_blk = (L - 1) // _HALO_LANES        # keep halo block starts in-bounds
        kernel = _make_multi_tile_kernel(scale, tl, lo)
        out = pl.pallas_call(
            kernel,
            out_shape=out_shape,
            grid=(n_tiles, B),                   # L tiles lead (megacore split)
            in_specs=[
                pl.BlockSpec((1, cin, tl * scale), lambda j, b: (b, 0, j)),
                pl.BlockSpec((1, cin, _HALO_LANES),
                             lambda j, b: (b, 0, jnp.maximum(j * bpt - 1, 0))),
                pl.BlockSpec((1, cin, _HALO_LANES),
                             lambda j, b: (b, 0, jnp.minimum((j + 1) * bpt,
                                                             last_blk))),
                pl.BlockSpec((_K * cin, cmid), lambda j, b: (0, 0)),
                pl.BlockSpec((_K * cmid, cout), lambda j, b: (0, 0)),
                pl.BlockSpec((1, cmid), lambda j, b: (0, 0)),
                pl.BlockSpec((1, cout), lambda j, b: (0, 0)),
            ],
            out_specs=pl.BlockSpec((1, cout, tl), lambda j, b: (b, 0, j)),
            compiler_params=pltpu.CompilerParams(
                dimension_semantics=("parallel", "parallel")),
        )(x, x, x, w1cat, w2cat, b1r, b2r)
    else:
        # Single-tile path (short sequences): one grid step per batch element.
        kernel = _make_single_tile_kernel(scale, lo)
        out = pl.pallas_call(
            kernel,
            out_shape=out_shape,
            grid=(B,),
            in_specs=[
                pl.BlockSpec((1, cin, L), lambda b: (b, 0, 0)),
                pl.BlockSpec((_K * cin, cmid), lambda b: (0, 0)),
                pl.BlockSpec((_K * cmid, cout), lambda b: (0, 0)),
                pl.BlockSpec((1, cmid), lambda b: (0, 0)),
                pl.BlockSpec((1, cout), lambda b: (0, 0)),
            ],
            out_specs=pl.BlockSpec((1, cout, lo), lambda b: (b, 0, 0)),
            compiler_params=pltpu.CompilerParams(
                dimension_semantics=("parallel",)),
        )(x, w1cat, w2cat, b1r, b2r)
    return out


# ----------------------------------------------------------------------------
# Deterministic parameter initialization (shapes follow the torch module).
# ----------------------------------------------------------------------------
def init_down_params(seed, in_channels, out_channels, mid_channels=None):
    if mid_channels is None:
        mid_channels = out_channels
    ks = jax.random.split(jax.random.PRNGKey(seed), 10)

    def conv_w(k, cin, cout):
        bound = 1.0 / math.sqrt(cin * 3)
        # torch Conv1d weight (cout, cin, K) stored here as (K, cin, cout).
        return jax.random.uniform(k, (3, cin, cout), jnp.float32, -bound, bound)

    return dict(
        w1=conv_w(ks[0], in_channels, mid_channels),
        w2=conv_w(ks[1], mid_channels, out_channels),
        bn1_gamma=jax.random.uniform(ks[2], (mid_channels,), jnp.float32, 0.5, 1.5),
        bn1_beta=jax.random.uniform(ks[3], (mid_channels,), jnp.float32, -0.1, 0.1),
        bn1_mean=jax.random.uniform(ks[4], (mid_channels,), jnp.float32, -0.1, 0.1),
        bn1_var=jax.random.uniform(ks[5], (mid_channels,), jnp.float32, 0.5, 1.5),
        bn2_gamma=jax.random.uniform(ks[6], (out_channels,), jnp.float32, 0.5, 1.5),
        bn2_beta=jax.random.uniform(ks[7], (out_channels,), jnp.float32, -0.1, 0.1),
        bn2_mean=jax.random.uniform(ks[8], (out_channels,), jnp.float32, -0.1, 0.1),
        bn2_var=jax.random.uniform(ks[9], (out_channels,), jnp.float32, 0.5, 1.5),
    )


# ----------------------------------------------------------------------------
# Pure-JAX reference (mirrors the kernel's bf16 cast points) for checking.
# NOTE: PyTorch runs fully in f32; the bf16 matmul operands make this kernel
# differ from torch by ~1e-3 relative (inference-acceptable).
# ----------------------------------------------------------------------------
def _reference_down(x, params, scale):
    eps = 1e-5
    B, cin, L = x.shape
    lo = L // scale
    cmid = params["w1"].shape[-1]
    cout = params["w2"].shape[-1]
    f32 = jnp.float32

    s1 = params["bn1_gamma"] * lax.rsqrt(params["bn1_var"] + eps)
    b1 = params["bn1_beta"] - params["bn1_mean"] * s1
    s2 = params["bn2_gamma"] * lax.rsqrt(params["bn2_var"] + eps)
    b2 = params["bn2_beta"] - params["bn2_mean"] * s2
    w1f = (params["w1"].reshape(3 * cin, cmid) * s1[None, :]
           ).astype(jnp.bfloat16).astype(f32).reshape(3, cin, cmid)
    w2f = (params["w2"].reshape(3 * cmid, cout) * s2[None, :]
           ).astype(jnp.bfloat16).astype(f32).reshape(3, cmid, cout)

    # MaxPool1d(scale) (floor division of L), then channels-last.
    xp = x[:, :, :lo * scale].astype(f32)
    pooled = jnp.transpose(xp.reshape(B, cin, lo, scale).max(axis=-1), (0, 2, 1))

    def conv_same(a, w):
        n = a.shape[1]
        ap = jnp.pad(a, ((0, 0), (1, 1), (0, 0)))
        y = jnp.zeros((B, n, w.shape[-1]), f32)
        for k in range(3):
            y = y + jnp.einsum("blc,cd->bld", ap[:, k:k + n, :], w[k],
                               precision=lax.Precision.HIGHEST)
        return y

    a1 = jnp.maximum(conv_same(pooled.astype(jnp.bfloat16).astype(f32), w1f) + b1, 0.0)
    y = jnp.maximum(conv_same(a1.astype(jnp.bfloat16).astype(f32), w2f) + b2, 0.0)
    return jnp.transpose(y, (0, 2, 1))


if __name__ == "__main__":
    def run_case(name, seed, batch, cin, cout, length, scale, tile_l):
        params = init_down_params(seed, cin, cout)
        x = jax.random.normal(jax.random.PRNGKey(seed), (batch, cin, length),
                              jnp.float32)
        fwd = jax.jit(functools.partial(down_forward, scale=scale, tile_l=tile_l))
        y = jax.block_until_ready(fwd(x, params))
        lo = length // scale
        assert y.shape == (batch, cout, lo), (name, y.shape)
        assert bool(jnp.all(jnp.isfinite(y))), name
        y_ref = _reference_down(x, params, scale)
        max_err = float(jnp.max(jnp.abs(y - y_ref)))
        assert jnp.allclose(y, y_ref, atol=2e-3, rtol=2e-3), (name, max_err)

    # Short sequence -> single-tile path (small demo shape).
    run_case("single_tile", 0, 2, 4, 8, 64, 2, 512)
    # Long sequence -> streamed multi-tile path (halo blocks, even split).
    run_case("multi_even", 1, 2, 4, 8, 768, 2, 128)
    # Ragged last tile + MaxPool floor remainder + odd channel counts.
    run_case("multi_ragged", 2, 2, 3, 6, 801, 2, 128)
    # Larger pooling factor, batch of 1, single tile.
    run_case("scale4", 3, 1, 3, 6, 50, 4, 512)

    print("KERNEL_OK")
</pallas_src>

<mosaic_0001>
module attributes {stable_mosaic.version = 11 : i64} {
  func.func @kernel(%arg0: i32, %arg1: memref<1x4x64xf32, #tpu.memory_space<vmem>>, %arg2: memref<12x8xbf16, #tpu.memory_space<vmem>>, %arg3: memref<24x8xbf16, #tpu.memory_space<vmem>>, %arg4: memref<1x8xf32, #tpu.memory_space<vmem>>, %arg5: memref<1x8xf32, #tpu.memory_space<vmem>>, %arg6: memref<1x8x32xf32, #tpu.memory_space<vmem>>) attributes {dimension_semantics = [#tpu.dimension_semantics<parallel>], iteration_bounds = array<i64: 2>, scalar_prefetch = 0 : i64, scratch_operands = 0 : i64, tpu.core_type = #tpu.core_type<tc>, window_params = [{transform_indices = @transform_0, window_bounds = array<i64: 1, 4, 64>}, {pipeline_mode = #tpu.pipeline_mode<synchronous>, transform_indices = @transform_1, window_bounds = array<i64: 12, 8>}, {pipeline_mode = #tpu.pipeline_mode<synchronous>, transform_indices = @transform_2, window_bounds = array<i64: 24, 8>}, {pipeline_mode = #tpu.pipeline_mode<synchronous>, transform_indices = @transform_3, window_bounds = array<i64: 1, 8>}, {pipeline_mode = #tpu.pipeline_mode<synchronous>, transform_indices = @transform_4, window_bounds = array<i64: 1, 8>}, {transform_indices = @transform_5, window_bounds = array<i64: 1, 8, 32>}]} {
    %c0 = arith.constant 0 : index
    %c0_0 = arith.constant 0 : index
    %c0_1 = arith.constant 0 : index
    %0 = vector.load %arg1[%c0, %c0_0, %c0_1] : memref<1x4x64xf32, #tpu.memory_space<vmem>>, vector<1x4x64xf32>
    %1 = vector.shape_cast %0 : vector<1x4x64xf32> to vector<4x64xf32>
    %2 = tpu.transpose %1, [1, 0] : vector<4x64xf32> -> vector<64x4xf32>
    %3 = vector.shape_cast %2 : vector<64x4xf32> to vector<32x2x4xf32>
    %cst = arith.constant dense<0xFF800000> : vector<32x4xf32>
    %4 = vector.multi_reduction <maximumf>, %3, %cst [1] : vector<32x2x4xf32> to vector<32x4xf32>
    %cst_2 = arith.constant 0.000000e+00 : f32
    %5 = vector.broadcast %cst_2 : f32 to vector<2x4xf32>
    %6 = tpu.concatenate %5, %4, %5 in 0 : vector<2x4xf32>, vector<32x4xf32>, vector<2x4xf32> -> vector<36x4xf32>
    %7 = tpu.iota {dimensions = array<i32: 0>} : vector<36x1xi32>
    %c-2_i32 = arith.constant -2 : i32
    %8 = vector.broadcast %c-2_i32 : i32 to vector<36x1xi32>
    %9 = arith.addi %7, %8 : vector<36x1xi32>
    %c0_i32 = arith.constant 0 : i32
    %10 = vector.broadcast %c0_i32 : i32 to vector<36x1xi32>
    %11 = arith.cmpi sge, %9, %10 : vector<36x1xi32>
    %c32_i32 = arith.constant 32 : i32
    %12 = vector.broadcast %c32_i32 : i32 to vector<36x1xi32>
    %13 = arith.cmpi slt, %9, %12 : vector<36x1xi32>
    %14 = arith.andi %11, %13 : vector<36x1xi1>
    %cst_3 = arith.constant 0.000000e+00 : f32
    %15 = vector.shape_cast %14 : vector<36x1xi1> to vector<36x1xi1>
    %16 = vector.broadcast %15 : vector<36x1xi1> to vector<36x4xi1>
    %17 = vector.broadcast %cst_3 : f32 to vector<36x4xf32>
    %18 = arith.select %16, %6, %17 : vector<36x4xi1>, vector<36x4xf32>
    %19 = arith.truncf %18 : vector<36x4xf32> to vector<36x4xbf16>
    %20 = vector.extract_strided_slice %19 {offsets = [0, 0], sizes = [34, 4], strides = [1, 1]} : vector<36x4xbf16> to vector<34x4xbf16>
    %21 = vector.extract_strided_slice %19 {offsets = [1, 0], sizes = [34, 4], strides = [1, 1]} : vector<36x4xbf16> to vector<34x4xbf16>
    %22 = vector.extract_strided_slice %19 {offsets = [2, 0], sizes = [34, 4], strides = [1, 1]} : vector<36x4xbf16> to vector<34x4xbf16>
    %23 = tpu.concatenate %20, %21, %22 in 1 : vector<34x4xbf16>, vector<34x4xbf16>, vector<34x4xbf16> -> vector<34x12xbf16>
    %c0_4 = arith.constant 0 : index
    %c0_5 = arith.constant 0 : index
    %24 = vector.load %arg2[%c0_4, %c0_5] : memref<12x8xbf16, #tpu.memory_space<vmem>>, vector<12x8xbf16>
    %cst_6 = arith.constant dense<0.000000e+00> : vector<34x8xf32>
    %25 = tpu.matmul %23, %24, %cst_6 {dimension_numbers = #tpu.dot_dimension_numbers<[1], [0], [0], [1], [0, 0, 1, 1], [], []>} : vector<34x12xbf16>, vector<12x8xbf16>, vector<34x8xf32> -> vector<34x8xf32>
    %c0_7 = arith.constant 0 : index
    %c0_8 = arith.constant 0 : index
    %26 = vector.load %arg4[%c0_7, %c0_8] : memref<1x8xf32, #tpu.memory_space<vmem>>, vector<1x8xf32>
    %27 = vector.broadcast %26 : vector<1x8xf32> to vector<34x8xf32>
    %28 = arith.addf %25, %27 : vector<34x8xf32>
    %cst_9 = arith.constant 0.000000e+00 : f32
    %29 = vector.broadcast %cst_9 : f32 to vector<34x8xf32>
    %30 = arith.maximumf %28, %29 : vector<34x8xf32>
    %31 = tpu.iota {dimensions = array<i32: 0>} : vector<34x1xi32>
    %c-1_i32 = arith.constant -1 : i32
    %32 = vector.broadcast %c-1_i32 : i32 to vector<34x1xi32>
    %33 = arith.addi %31, %32 : vector<34x1xi32>
    %c0_i32_10 = arith.constant 0 : i32
    %34 = vector.broadcast %c0_i32_10 : i32 to vector<34x1xi32>
    %35 = arith.cmpi sge, %33, %34 : vector<34x1xi32>
    %c32_i32_11 = arith.constant 32 : i32
    %36 = vector.broadcast %c32_i32_11 : i32 to vector<34x1xi32>
    %37 = arith.cmpi slt, %33, %36 : vector<34x1xi32>
    %38 = arith.andi %35, %37 : vector<34x1xi1>
    %cst_12 = arith.constant 0.000000e+00 : f32
    %39 = vector.shape_cast %38 : vector<34x1xi1> to vector<34x1xi1>
    %40 = vector.broadcast %39 : vector<34x1xi1> to vector<34x8xi1>
    %41 = vector.broadcast %cst_12 : f32 to vector<34x8xf32>
    %42 = arith.select %40, %30, %41 : vector<34x8xi1>, vector<34x8xf32>
    %43 = arith.truncf %42 : vector<34x8xf32> to vector<34x8xbf16>
    %44 = vector.extract_strided_slice %43 {offsets = [0, 0], sizes = [32, 8], strides = [1, 1]} : vector<34x8xbf16> to vector<32x8xbf16>
    %45 = vector.extract_strided_slice %43 {offsets = [1, 0], sizes = [32, 8], strides = [1, 1]} : vector<34x8xbf16> to vector<32x8xbf16>
    %46 = vector.extract_strided_slice %43 {offsets = [2, 0], sizes = [32, 8], strides = [1, 1]} : vector<34x8xbf16> to vector<32x8xbf16>
    %47 = tpu.concatenate %44, %45, %46 in 1 : vector<32x8xbf16>, vector<32x8xbf16>, vector<32x8xbf16> -> vector<32x24xbf16>
    %c0_13 = arith.constant 0 : index
    %c0_14 = arith.constant 0 : index
    %48 = vector.load %arg3[%c0_13, %c0_14] : memref<24x8xbf16, #tpu.memory_space<vmem>>, vector<24x8xbf16>
    %cst_15 = arith.constant dense<0.000000e+00> : vector<32x8xf32>
    %49 = tpu.matmul %47, %48, %cst_15 {dimension_numbers = #tpu.dot_dimension_numbers<[1], [0], [0], [1], [0, 0, 1, 1], [], []>} : vector<32x24xbf16>, vector<24x8xbf16>, vector<32x8xf32> -> vector<32x8xf32>
    %c0_16 = arith.constant 0 : index
    %c0_17 = arith.constant 0 : index
    %50 = vector.load %arg5[%c0_16, %c0_17] : memref<1x8xf32, #tpu.memory_space<vmem>>, vector<1x8xf32>
    %51 = vector.broadcast %50 : vector<1x8xf32> to vector<32x8xf32>
    %52 = arith.addf %49, %51 : vector<32x8xf32>
    %cst_18 = arith.constant 0.000000e+00 : f32
    %53 = vector.broadcast %cst_18 : f32 to vector<32x8xf32>
    %54 = arith.maximumf %52, %53 : vector<32x8xf32>
    %55 = tpu.transpose %54, [1, 0] : vector<32x8xf32> -> vector<8x32xf32>
    %c0_19 = arith.constant 0 : index
    %c0_20 = arith.constant 0 : index
    %c0_21 = arith.constant 0 : index
    %56 = vector.load %arg6[%c0_19, %c0_20, %c0_21] : memref<1x8x32xf32, #tpu.memory_space<vmem>>, vector<1x8x32xf32>
    %57 = vector.shape_cast %56 : vector<1x8x32xf32> to vector<8x32xf32>
    %58 = vector.shape_cast %55 : vector<8x32xf32> to vector<1x8x32xf32>
    tpu.vector_store %arg6[%c0_19, %c0_20, %c0_21], %58 {strides = array<i32>} : memref<1x8x32xf32, #tpu.memory_space<vmem>>, vector<1x8x32xf32>,
    return
  }
  func.func @transform_0(%arg0: i32) -> (i32, i32, i32) {
    %c0_i32 = arith.constant 0 : i32
    %c0_i32_0 = arith.constant 0 : i32
    %c0_i32_1 = arith.constant 0 : i32
    return %arg0, %c0_i32, %c0_i32_0 : i32, i32, i32
  }
  func.func @transform_1(%arg0: i32) -> (i32, i32) {
    %c0_i32 = arith.constant 0 : i32
    %c0_i32_0 = arith.constant 0 : i32
    %c0_i32_1 = arith.constant 0 : i32
    return %c0_i32, %c0_i32_0 : i32, i32
  }
  func.func @transform_2(%arg0: i32) -> (i32, i32) {
    %c0_i32 = arith.constant 0 : i32
    %c0_i32_0 = arith.constant 0 : i32
    %c0_i32_1 = arith.constant 0 : i32
    return %c0_i32, %c0_i32_0 : i32, i32
  }
  func.func @transform_3(%arg0: i32) -> (i32, i32) {
    %c0_i32 = arith.constant 0 : i32
    %c0_i32_0 = arith.constant 0 : i32
    %c0_i32_1 = arith.constant 0 : i32
    return %c0_i32, %c0_i32_0 : i32, i32
  }
  func.func @transform_4(%arg0: i32) -> (i32, i32) {
    %c0_i32 = arith.constant 0 : i32
    %c0_i32_0 = arith.constant 0 : i32
    %c0_i32_1 = arith.constant 0 : i32
    return %c0_i32, %c0_i32_0 : i32, i32
  }
  func.func @transform_5(%arg0: i32) -> (i32, i32, i32) {
    %c0_i32 = arith.constant 0 : i32
    %c0_i32_0 = arith.constant 0 : i32
    %c0_i32_1 = arith.constant 0 : i32
    return %arg0, %c0_i32, %c0_i32_0 : i32, i32, i32
  }
}

</mosaic_0001>

<llo_original>
// kernel: down_forward.1
$region0: #{down_forward.1}
  #allocation0 [shape = 'u32[]', space=smem, size = 0x4, offset = 0x4, fixed_abs, tag = 'smem constant byte address 0x4 - core index']
  #allocation1 [shape = 'u32[144,128]{1,0:T(1,128)}', space=vmem, size = 0x12000, scoped, tag = 'internal scratch']
  %s0 = inlined_call_operand.vmem [shape: f32[2,4,64], index: 0, kind: input, shape index: {}]
  %s1 = inlined_call_operand.vmem [shape: bf16[12,8], index: 1, kind: input, shape index: {}]
  %s2 = inlined_call_operand.vmem [shape: bf16[24,8], index: 2, kind: input, shape index: {}]
  %s3 = inlined_call_operand.vmem [shape: f32[1,8], index: 3, kind: input, shape index: {}]
  %s4 = inlined_call_operand.vmem [shape: f32[1,8], index: 4, kind: input, shape index: {}]
  %s5 = inlined_call_operand.hbm [shape: f32[2,8,32], index: 5, kind: output, shape index: {}]
  %s6 = sld [smem:[#allocation0]]
  $region53: #{down_forward.1} parent=0
    _
  %s8 = ssub.s32 1, %s6
  %s9 = scalar_select 0, %s8, %s6
  $region1: #{down_forward.1} parent=0
    #allocation2 [shape = 'u8[8192]{0}', space=vmem, size = 0x2000, scoped, tag = 'output window, operand 0']
    #allocation3 [shape = 's32[2]{0}', space=sflag, size = 0x8, scoped, tag = 'scoped memory for down_forward.1']
    %10 = vsyncpa [#allocation3], 0
    %s11 = scalar_lea.sflag [#allocation3], 1
    %12 = vsyncpa %s11, 0
    loop: start=0, step=1, limit=4
    $region2: #{down_forward.1} parent=1 // loop_pre_header
      _
    $region3: #{down_forward.1} parent=1 // loop_header
      %s14 = sphi 0, %s18
      %p15 = scmp.ge.s32.totalorder %s14, 4
      %s24 = sphi 0, %s26
      %s27 = sphi 0, %s24
      %s28 = sphi 0, %s27
      %s44 = sphi 0, %s28
      %s48 = sphi 0, %s48
      %s50 = sphi 0, %s48
      %s51 = sphi 0, %s50
      %s65 = sphi 0, %s51
      %s69 = sphi 0, %s69
      %s71 = sphi 0, %s69
      %s72 = sphi 0, %s71
      %s86 = sphi 0, %s72
      %s90 = sphi 0, %s90
      %s92 = sphi 0, %s90
      %s93 = sphi 0, %s92
      %s107 = sphi 0, %s93
      %s111 = sphi 0, %s111
      %s113 = sphi 0, %s111
      %s114 = sphi 0, %s113
      %s128 = sphi 0, %s114
      %s134 = sphi 0, %s136
      %s137 = sphi 0, %s134
      %s138 = sphi 0, %s137
      %s154 = sphi 0, %s138
    $region4: #{down_forward.1} parent=1 // loop_header_branch
      %17 = sbr.rel (%p15) target = $region8
    $region5: #{down_forward.1} parent=1 // loop_body
      %s19 = ssub.s32 %s14, 1
      %s20 = ssub.s32 %s14, 2
      %s21 = sadd.s32 %s14, 1
      %s22 = ssub.s32 %s14, %s21
      %p23 = scmp.eq.s32.totalorder %s22, 0
      %s25 = sadd.s32 %s24, 1
      %s26 = scalar_select %p23, %s24, %s25
      %p29 = pneg %p23
      %p30 = scmp.eq.s32.totalorder %s14, 1
      %p31 = por %p29, %p30
      %p32 = scmp.ne.s32.totalorder %s24, %s27
      %p33 = scmp.eq.s32.totalorder %s14, 0
      %p34 = por %p32, %p33
      %p35 = scmp.ne.s32.totalorder %s24, %s27
      %p36 = scmp.eq.s32.totalorder %s19, 1
      %p37 = por %p35, %p36
      %p38 = scmp.ne.s32.totalorder %s27, %s28
      %p39 = scmp.eq.s32.totalorder %s19, 0
      %p40 = por %p38, %p39
      %p41 = scmp.ne.s32.totalorder %s27, %s28
      %p42 = scmp.eq.s32.totalorder %s20, 1
      %p43 = por %p41, %p42
      %p45 = scmp.ne.s32.totalorder %s28, %s44
      %p46 = scmp.eq.s32.totalorder %s20, 0
      %p47 = por %p45, %p46
      %s49 = sadd.s32 %s48, 1
      %p52 = scmp.eq.s32.totalorder %s14, 1
      %p53 = scmp.ne.s32.totalorder %s48, %s50
      %p54 = scmp.eq.s32.totalorder %s14, 0
      %p55 = por %p53, %p54
      %p56 = scmp.ne.s32.totalorder %s48, %s50
      %p57 = scmp.eq.s32.totalorder %s19, 1
      %p58 = por %p56, %p57
      %p59 = scmp.ne.s32.totalorder %s50, %s51
      %p60 = scmp.eq.s32.totalorder %s19, 0
      %p61 = por %p59, %p60
      %p62 = scmp.ne.s32.totalorder %s50, %s51
      %p63 = scmp.eq.s32.totalorder %s20, 1
      %p64 = por %p62, %p63
      %p66 = scmp.ne.s32.totalorder %s51, %s65
      %p67 = scmp.eq.s32.totalorder %s20, 0
      %p68 = por %p66, %p67
      %s70 = sadd.s32 %s69, 1
      %p73 = scmp.eq.s32.totalorder %s14, 1
      %p74 = scmp.ne.s32.totalorder %s69, %s71
      %p75 = scmp.eq.s32.totalorder %s14, 0
      %p76 = por %p74, %p75
      %p77 = scmp.ne.s32.totalorder %s69, %s71
      %p78 = scmp.eq.s32.totalorder %s19, 1
      %p79 = por %p77, %p78
      %p80 = scmp.ne.s32.totalorder %s71, %s72
      %p81 = scmp.eq.s32.totalorder %s19, 0
      %p82 = por %p80, %p81
      %p83 = scmp.ne.s32.totalorder %s71, %s72
      %p84 = scmp.eq.s32.totalorder %s20, 1
      %p85 = por %p83, %p84
      %p87 = scmp.ne.s32.totalorder %s72, %s86
      %p88 = scmp.eq.s32.totalorder %s20, 0
      %p89 = por %p87, %p88
      %s91 = sadd.s32 %s90, 1
      %p94 = scmp.eq.s32.totalorder %s14, 1
      %p95 = scmp.ne.s32.totalorder %s90, %s92
      %p96 = scmp.eq.s32.totalorder %s14, 0
      %p97 = por %p95, %p96
      %p98 = scmp.ne.s32.totalorder %s90, %s92
      %p99 = scmp.eq.s32.totalorder %s19, 1
      %p100 = por %p98, %p99
      %p101 = scmp.ne.s32.totalorder %s92, %s93
      %p102 = scmp.eq.s32.totalorder %s19, 0
      %p103 = por %p101, %p102
      %p104 = scmp.ne.s32.totalorder %s92, %s93
      %p105 = scmp.eq.s32.totalorder %s20, 1
      %p106 = por %p104, %p105
      %p108 = scmp.ne.s32.totalorder %s93, %s107
      %p109 = scmp.eq.s32.totalorder %s20, 0
      %p110 = por %p108, %p109
      %s112 = sadd.s32 %s111, 1
      %p115 = scmp.eq.s32.totalorder %s14, 1
      %p116 = scmp.ne.s32.totalorder %s111, %s113
      %p117 = scmp.eq.s32.totalorder %s14, 0
      %p118 = por %p116, %p117
      %p119 = scmp.ne.s32.totalorder %s111, %s113
      %p120 = scmp.eq.s32.totalorder %s19, 1
      %p121 = por %p119, %p120
      %p122 = scmp.ne.s32.totalorder %s113, %s114
      %p123 = scmp.eq.s32.totalorder %s19, 0
      %p124 = por %p122, %p123
      %p125 = scmp.ne.s32.totalorder %s113, %s114
      %p126 = scmp.eq.s32.totalorder %s20, 1
      %p127 = por %p125, %p126
      %p129 = scmp.ne.s32.totalorder %s114, %s128
      %p130 = scmp.eq.s32.totalorder %s20, 0
      %p131 = por %p129, %p130
      %s132 = ssub.s32 %s14, %s21
      %p133 = scmp.eq.s32.totalorder %s132, 0
      %s135 = sadd.s32 %s134, 1
      %s136 = scalar_select %p133, %s134, %s135
      %p139 = pneg %p133
      %p140 = scmp.eq.s32.totalorder %s14, 1
      %p141 = por %p139, %p140
      %p142 = scmp.ne.s32.totalorder %s134, %s137
      %p143 = scmp.eq.s32.totalorder %s14, 0
      %p144 = por %p142, %p143
      %p145 = scmp.ne.s32.totalorder %s134, %s137
      %p146 = scmp.eq.s32.totalorder %s19, 1
      %p147 = por %p145, %p146
      %p148 = scmp.ne.s32.totalorder %s137, %s138
      %p149 = scmp.eq.s32.totalorder %s19, 0
      %p150 = por %p148, %p149
      %p151 = scmp.ne.s32.totalorder %s137, %s138
      %p152 = scmp.eq.s32.totalorder %s20, 1
      %p153 = por %p151, %p152
      %p155 = scmp.ne.s32.totalorder %s138, %s154
      %p156 = scmp.eq.s32.totalorder %s20, 0
      %p157 = por %p155, %p156
      %p158 = scmp.le.s32.totalorder 1, %s14
      %p159 = scmp.lt.s32.totalorder %s14, 3
      %p160 = pnand %p158, %p159
      %p161 = pneg %p160
      // Predicated region
      $region9: #{down_forward.1} parent=5 // pred_check
        _
      $region10: #{down_forward.1} parent=5 // pred_check_branch
        %163 = sbr.rel (%p160) target = $region12
      $region11: #{down_forward.1} parent=5 // pred_region
        %s164 = ssub.s32 %s14, 1
        // Predicated region
        $region13: #{down_forward.1} parent=11 // pred_check
          %p165 = pneg %p61
        $region14: #{down_forward.1} parent=11 // pred_check_branch
          %167 = sbr.rel (%p165) target = $region16
        $region15: #{down_forward.1} parent=11 // pred_region
          _
        $region16: #{down_forward.1} parent=11 // pred_fallthru
          _
        // Predicated region
        $region17: #{down_forward.1} parent=11 // pred_check
          %p168 = pneg %p82
        $region18: #{down_forward.1} parent=11 // pred_check_branch
          %170 = sbr.rel (%p168) target = $region20
        $region19: #{down_forward.1} parent=11 // pred_region
          _
        $region20: #{down_forward.1} parent=11 // pred_fallthru
          _
        // Predicated region
        $region21: #{down_forward.1} parent=11 // pred_check
          %p171 = pneg %p103
        $region22: #{down_forward.1} parent=11 // pred_check_branch
          %173 = sbr.rel (%p171) target = $region24
        $region23: #{down_forward.1} parent=11 // pred_region
          _
        $region24: #{down_forward.1} parent=11 // pred_fallthru
          _
        // Predicated region
        $region25: #{down_forward.1} parent=11 // pred_check
          %p174 = pneg %p124
        $region26: #{down_forward.1} parent=11 // pred_check_branch
          %176 = sbr.rel (%p174) target = $region28
        $region27: #{down_forward.1} parent=11 // pred_region
          _
        $region28: #{down_forward.1} parent=11 // pred_fallthru
          _
      $region12: #{down_forward.1} parent=5 // pred_fallthru
        _
      %p177 = scmp.lt.s32.totalorder %s14, 2
      // Predicated region
      $region29: #{down_forward.1} parent=5 // pred_check
        %p178 = pneg %p177
      $region30: #{down_forward.1} parent=5 // pred_check_branch
        %180 = sbr.rel (%p178) target = $region32
      $region31: #{down_forward.1} parent=5 // pred_region
        // Predicated region
        $region33: #{down_forward.1} parent=31 // pred_check
          %p181 = pneg %p34
        $region34: #{down_forward.1} parent=31 // pred_check_branch
          %183 = sbr.rel (%p181) target = $region36
        $region35: #{down_forward.1} parent=31 // pred_region
          %p184 = scmp.lt.s32.totalorder %s14, 1
          %s185 = scalar_select %p184, %s14, 1
          %s186 = smul.addr %s185, 4
          %s187 = scalar_lea.vmem %s0, %s186
        $region36: #{down_forward.1} parent=31 // pred_fallthru
          _
      $region32: #{down_forward.1} parent=5 // pred_fallthru
        _
      %p188 = scmp.le.s32.totalorder 1, %s14
      %p189 = scmp.lt.s32.totalorder %s14, 3
      %p190 = pnand %p188, %p189
      %p191 = pneg %p190
      // Predicated region
      $region37: #{down_forward.1} parent=5 // pred_check
        _
      $region38: #{down_forward.1} parent=5 // pred_check_branch
        %193 = sbr.rel (%p190) target = $region40
      $region39: #{down_forward.1} parent=5 // pred_region
        %s194 = ssub.s32 %s14, 1
        %p195 = scmp.lt.s32.totalorder %s19, 1
        %s196 = scalar_select %p195, %s19, 1
        %s197 = smul.addr %s196, 4
        %s198 = scalar_lea.vmem %s0, %s197
        %p199 = pneg %p40
        %p200 = pneg %p37
        %p201 = pneg %p61
        %p202 = pneg %p58
        %p203 = pneg %p82
        %p204 = pneg %p79
        %p205 = pneg %p103
        %p206 = pneg %p100
        %p207 = pneg %p124
        %p208 = pneg %p121
        %p209 = pneg %p150
        %p210 = pneg %p147
        %s211 = sand.u32 %s137, 1
        %s212 = scalar_lea.sflag [#allocation3], %s211
        %s213 = sand.u32 %s137, 1
        %s214 = smul.addr %s213, 8
        %s215 = scalar_lea.vmem [#allocation2], %s214
        %p216 = scmp.lt.s32.totalorder %s19, 1
        %s217 = scalar_select %p216, %s19, 1
        %s218 = smul.addr %s217, 4
        %s219 = scalar_lea.vmem %s0, %s218
        %v221 = vld [vmem:[%s219] sm:$0xf]
        %222 = vxpose.xlu0.b32.start [1/16] %v221, 128
        %223 = vxpose.xlu0.b32.cont [2/16] 0.0, 128
        %224 = vxpose.xlu0.b32.cont [3/16] 0.0, 128
        %225 = vxpose.xlu0.b32.cont [4/16] 0.0, 128
        %226 = vxpose.xlu0.b32.cont [5/16] 0.0, 128
        %227 = vxpose.xlu0.b32.cont [6/16] 0.0, 128
        %228 = vxpose.xlu0.b32.cont [7/16] 0.0, 128
        %229 = vxpose.xlu0.b32.cont [8/16] 0.0, 128
        %230 = vxpose.xlu0.b32.cont [9/16] 0.0, 128
        %231 = vxpose.xlu0.b32.cont [10/16] 0.0, 128
        %232 = vxpose.xlu0.b32.cont [11/16] 0.0, 128
        %233 = vxpose.xlu0.b32.cont [12/16] 0.0, 128
        %234 = vxpose.xlu0.b32.cont [13/16] 0.0, 128
        %235 = vxpose.xlu0.b32.cont [14/16] 0.0, 128
        %236 = vxpose.xlu0.b32.cont [15/16] 0.0, 128
        %237 = vxpose.xlu0.b32.end [16/16] 0.0, 128
        %v238 = vpop.trf.xlu0
        %v239 = vpop.trf.xlu0
        %v240 = vpop.trf.xlu0
        %v241 = vpop.trf.xlu0
        %v242 = vpop.trf.xlu0
        %v243 = vpop.trf.xlu0
        %v244 = vpop.trf.xlu0
        %v245 = vpop.trf.xlu0
        %v246 = vpop.trf.xlu0
        %v247 = vpop.trf.xlu0
        %v248 = vpop.trf.xlu0
        %v249 = vpop.trf.xlu0
        %v250 = vpop.trf.xlu0
        %v251 = vpop.trf.xlu0
        %v252 = vpop.trf.xlu0
        %v253 = vpop.trf.xlu0
        %v262 = vcombine.high %v238, %v238
        %v264 = vunpack.c.l.s4 1983009808
        %v265 = vunpack.c.0.s8 %v264
        %v266 = vlaneseq
        %v267 = vshrl.u32 %v266, 7
        %v268 = vsub.s32 %v265, %v267
        %v269 = vrot.slane %v238, %v268
        %v271 = vunpack.c.l.s4 1983009808
        %v272 = vunpack.c.0.s8 %v271
        %v273 = vlaneseq
        %v274 = vshrl.u32 %v273, 7
        %v275 = vsub.s32 %v272, %v274
        %v276 = vrot.slane %v262, %v275
        %v277 = vcombine.high %v269, %v269
        %v278 = vcombine.high %v276, %v276
        %v279 = vcombine.high %v239, %v239
        %v281 = vunpack.c.l.s4 1983009808
        %v282 = vunpack.c.0.s8 %v281
        %v283 = vlaneseq
        %v284 = vshrl.u32 %v283, 7
        %v285 = vsub.s32 %v282, %v284
        %v286 = vrot.slane %v239, %v285
        %v288 = vunpack.c.l.s4 1983009808
        %v289 = vunpack.c.0.s8 %v288
        %v290 = vlaneseq
        %v291 = vshrl.u32 %v290, 7
        %v292 = vsub.s32 %v289, %v291
        %v293 = vrot.slane %v279, %v292
        %v294 = vcombine.high %v286, %v286
        %v295 = vcombine.high %v293, %v293
        %v296 = vcombine.high %v240, %v240
        %v298 = vunpack.c.l.s4 1983009808
        %v299 = vunpack.c.0.s8 %v298
        %v300 = vlaneseq
        %v301 = vshrl.u32 %v300, 7
        %v302 = vsub.s32 %v299, %v301
        %v303 = vrot.slane %v240, %v302
        %v305 = vunpack.c.l.s4 1983009808
        %v306 = vunpack.c.0.s8 %v305
        %v307 = vlaneseq
        %v308 = vshrl.u32 %v307, 7
        %v309 = vsub.s32 %v306, %v308
        %v310 = vrot.slane %v296, %v309
        %v311 = vcombine.high %v303, %v303
        %v312 = vcombine.high %v310, %v310
        %v313 = vcombine.high %v241, %v241
        %v315 = vunpack.c.l.s4 1983009808
        %v316 = vunpack.c.0.s8 %v315
        %v317 = vlaneseq
        %v318 = vshrl.u32 %v317, 7
        %v319 = vsub.s32 %v316, %v318
        %v320 = vrot.slane %v241, %v319
        %v322 = vunpack.c.l.s4 1983009808
        %v323 = vunpack.c.0.s8 %v322
        %v324 = vlaneseq
        %v325 = vshrl.u32 %v324, 7
        %v326 = vsub.s32 %v323, %v325
        %v327 = vrot.slane %v313, %v326
        %v328 = vcombine.high %v320, %v320
        %v329 = vcombine.high %v327, %v327
        %v330 = vcombine.high %v242, %v242
        %v332 = vunpack.c.l.s4 1983009808
        %v333 = vunpack.c.0.s8 %v332
        %v334 = vlaneseq
        %v335 = vshrl.u32 %v334, 7
        %v336 = vsub.s32 %v333, %v335
        %v337 = vrot.slane %v242, %v336
        %v339 = vunpack.c.l.s4 1983009808
        %v340 = vunpack.c.0.s8 %v339
        %v341 = vlaneseq
        %v342 = vshrl.u32 %v341, 7
        %v343 = vsub.s32 %v340, %v342
        %v344 = vrot.slane %v330, %v343
        %v345 = vcombine.high %v337, %v337
        %v346 = vcombine.high %v344, %v344
        %v347 = vcombine.high %v243, %v243
        %v349 = vunpack.c.l.s4 1983009808
        %v350 = vunpack.c.0.s8 %v349
        %v351 = vlaneseq
        %v352 = vshrl.u32 %v351, 7
        %v353 = vsub.s32 %v350, %v352
        %v354 = vrot.slane %v243, %v353
        %v356 = vunpack.c.l.s4 1983009808
        %v357 = vunpack.c.0.s8 %v356
        %v358 = vlaneseq
        %v359 = vshrl.u32 %v358, 7
        %v360 = vsub.s32 %v357, %v359
        %v361 = vrot.slane %v347, %v360
        %v362 = vcombine.high %v354, %v354
        %v363 = vcombine.high %v361, %v361
        %v364 = vcombine.high %v244, %v244
        %v366 = vunpack.c.l.s4 1983009808
        %v367 = vunpack.c.0.s8 %v366
        %v368 = vlaneseq
        %v369 = vshrl.u32 %v368, 7
        %v370 = vsub.s32 %v367, %v369
        %v371 = vrot.slane %v244, %v370
        %v373 = vunpack.c.l.s4 1983009808
        %v374 = vunpack.c.0.s8 %v373
        %v375 = vlaneseq
        %v376 = vshrl.u32 %v375, 7
        %v377 = vsub.s32 %v374, %v376
        %v378 = vrot.slane %v364, %v377
        %v379 = vcombine.high %v371, %v371
        %v380 = vcombine.high %v378, %v378
        %v381 = vcombine.high %v245, %v245
        %v383 = vunpack.c.l.s4 1983009808
        %v384 = vunpack.c.0.s8 %v383
        %v385 = vlaneseq
        %v386 = vshrl.u32 %v385, 7
        %v387 = vsub.s32 %v384, %v386
        %v388 = vrot.slane %v245, %v387
        %v390 = vunpack.c.l.s4 1983009808
        %v391 = vunpack.c.0.s8 %v390
        %v392 = vlaneseq
        %v393 = vshrl.u32 %v392, 7
        %v394 = vsub.s32 %v391, %v393
        %v395 = vrot.slane %v381, %v394
        %v396 = vcombine.high %v388, %v388
        %v397 = vcombine.high %v395, %v395
        %vm430 = vcmask 25600
        %v431 = vsel %vm430, %v269, -inf
        %v432 = vrot.slane %v431, 4
        %v433 = vmax.f32 %v431, %v432
        %v434 = vrot.slane %v433, 2
        %v435 = vmax.f32 %v433, %v434
        %v436 = vrot.slane %v435, 1
        %v437 = vmax.f32 %v435, %v436
        %v438 = vsel %vm430, %v277, -inf
        %v439 = vrot.slane %v438, 4
        %v440 = vmax.f32 %v438, %v439
        %v441 = vrot.slane %v440, 2
        %v442 = vmax.f32 %v440, %v441
        %v443 = vrot.slane %v442, 1
        %v444 = vmax.f32 %v442, %v443
        %v445 = vsel %vm430, %v276, -inf
        %v446 = vrot.slane %v445, 4
        %v447 = vmax.f32 %v445, %v446
        %v448 = vrot.slane %v447, 2
        %v449 = vmax.f32 %v447, %v448
        %v450 = vrot.slane %v449, 1
        %v451 = vmax.f32 %v449, %v450
        %v452 = vsel %vm430, %v278, -inf
        %v453 = vrot.slane %v452, 4
        %v454 = vmax.f32 %v452, %v453
        %v455 = vrot.slane %v454, 2
        %v456 = vmax.f32 %v454, %v455
        %v457 = vrot.slane %v456, 1
        %v458 = vmax.f32 %v456, %v457
        %v459 = vsel %vm430, %v286, -inf
        %v460 = vrot.slane %v459, 4
        %v461 = vmax.f32 %v459, %v460
        %v462 = vrot.slane %v461, 2
        %v463 = vmax.f32 %v461, %v462
        %v464 = vrot.slane %v463, 1
        %v465 = vmax.f32 %v463, %v464
        %v466 = vsel %vm430, %v294, -inf
        %v467 = vrot.slane %v466, 4
        %v468 = vmax.f32 %v466, %v467
        %v469 = vrot.slane %v468, 2
        %v470 = vmax.f32 %v468, %v469
        %v471 = vrot.slane %v470, 1
        %v472 = vmax.f32 %v470, %v471
        %v473 = vsel %vm430, %v293, -inf
        %v474 = vrot.slane %v473, 4
        %v475 = vmax.f32 %v473, %v474
        %v476 = vrot.slane %v475, 2
        %v477 = vmax.f32 %v475, %v476
        %v478 = vrot.slane %v477, 1
        %v479 = vmax.f32 %v477, %v478
        %v480 = vsel %vm430, %v295, -inf
        %v481 = vrot.slane %v480, 4
        %v482 = vmax.f32 %v480, %v481
        %v483 = vrot.slane %v482, 2
        %v484 = vmax.f32 %v482, %v483
        %v485 = vrot.slane %v484, 1
        %v486 = vmax.f32 %v484, %v485
        %v487 = vsel %vm430, %v303, -inf
        %v488 = vrot.slane %v487, 4
        %v489 = vmax.f32 %v487, %v488
        %v490 = vrot.slane %v489, 2
        %v491 = vmax.f32 %v489, %v490
        %v492 = vrot.slane %v491, 1
        %v493 = vmax.f32 %v491, %v492
        %v494 = vsel %vm430, %v311, -inf
        %v495 = vrot.slane %v494, 4
        %v496 = vmax.f32 %v494, %v495
        %v497 = vrot.slane %v496, 2
        %v498 = vmax.f32 %v496, %v497
        %v499 = vrot.slane %v498, 1
        %v500 = vmax.f32 %v498, %v499
        %v501 = vsel %vm430, %v310, -inf
        %v502 = vrot.slane %v501, 4
        %v503 = vmax.f32 %v501, %v502
        %v504 = vrot.slane %v503, 2
        %v505 = vmax.f32 %v503, %v504
        %v506 = vrot.slane %v505, 1
        %v507 = vmax.f32 %v505, %v506
        %v508 = vsel %vm430, %v312, -inf
        %v509 = vrot.slane %v508, 4
        %v510 = vmax.f32 %v508, %v509
        %v511 = vrot.slane %v510, 2
        %v512 = vmax.f32 %v510, %v511
        %v513 = vrot.slane %v512, 1
        %v514 = vmax.f32 %v512, %v513
        %v515 = vsel %vm430, %v320, -inf
        %v516 = vrot.slane %v515, 4
        %v517 = vmax.f32 %v515, %v516
        %v518 = vrot.slane %v517, 2
        %v519 = vmax.f32 %v517, %v518
        %v520 = vrot.slane %v519, 1
        %v521 = vmax.f32 %v519, %v520
        %v522 = vsel %vm430, %v328, -inf
        %v523 = vrot.slane %v522, 4
        %v524 = vmax.f32 %v522, %v523
        %v525 = vrot.slane %v524, 2
        %v526 = vmax.f32 %v524, %v525
        %v527 = vrot.slane %v526, 1
        %v528 = vmax.f32 %v526, %v527
        %v529 = vsel %vm430, %v327, -inf
        %v530 = vrot.slane %v529, 4
        %v531 = vmax.f32 %v529, %v530
        %v532 = vrot.slane %v531, 2
        %v533 = vmax.f32 %v531, %v532
        %v534 = vrot.slane %v533, 1
        %v535 = vmax.f32 %v533, %v534
        %v536 = vsel %vm430, %v329, -inf
        %v537 = vrot.slane %v536, 4
        %v538 = vmax.f32 %v536, %v537
        %v539 = vrot.slane %v538, 2
        %v540 = vmax.f32 %v538, %v539
        %v541 = vrot.slane %v540, 1
        %v542 = vmax.f32 %v540, %v541
        %v543 = vsel %vm430, %v337, -inf
        %v544 = vrot.slane %v543, 4
        %v545 = vmax.f32 %v543, %v544
        %v546 = vrot.slane %v545, 2
        %v547 = vmax.f32 %v545, %v546
        %v548 = vrot.slane %v547, 1
        %v549 = vmax.f32 %v547, %v548
        %v550 = vsel %vm430, %v345, -inf
        %v551 = vrot.slane %v550, 4
        %v552 = vmax.f32 %v550, %v551
        %v553 = vrot.slane %v552, 2
        %v554 = vmax.f32 %v552, %v553
        %v555 = vrot.slane %v554, 1
        %v556 = vmax.f32 %v554, %v555
        %v557 = vsel %vm430, %v344, -inf
        %v558 = vrot.slane %v557, 4
        %v559 = vmax.f32 %v557, %v558
        %v560 = vrot.slane %v559, 2
        %v561 = vmax.f32 %v559, %v560
        %v562 = vrot.slane %v561, 1
        %v563 = vmax.f32 %v561, %v562
        %v564 = vsel %vm430, %v346, -inf
        %v565 = vrot.slane %v564, 4
        %v566 = vmax.f32 %v564, %v565
        %v567 = vrot.slane %v566, 2
        %v568 = vmax.f32 %v566, %v567
        %v569 = vrot.slane %v568, 1
        %v570 = vmax.f32 %v568, %v569
        %v571 = vsel %vm430, %v354, -inf
        %v572 = vrot.slane %v571, 4
        %v573 = vmax.f32 %v571, %v572
        %v574 = vrot.slane %v573, 2
        %v575 = vmax.f32 %v573, %v574
        %v576 = vrot.slane %v575, 1
        %v577 = vmax.f32 %v575, %v576
        %v578 = vsel %vm430, %v362, -inf
        %v579 = vrot.slane %v578, 4
        %v580 = vmax.f32 %v578, %v579
        %v581 = vrot.slane %v580, 2
        %v582 = vmax.f32 %v580, %v581
        %v583 = vrot.slane %v582, 1
        %v584 = vmax.f32 %v582, %v583
        %v585 = vsel %vm430, %v361, -inf
        %v586 = vrot.slane %v585, 4
        %v587 = vmax.f32 %v585, %v586
        %v588 = vrot.slane %v587, 2
        %v589 = vmax.f32 %v587, %v588
        %v590 = vrot.slane %v589, 1
        %v591 = vmax.f32 %v589, %v590
        %v592 = vsel %vm430, %v363, -inf
        %v593 = vrot.slane %v592, 4
        %v594 = vmax.f32 %v592, %v593
        %v595 = vrot.slane %v594, 2
        %v596 = vmax.f32 %v594, %v595
        %v597 = vrot.slane %v596, 1
        %v598 = vmax.f32 %v596, %v597
        %v599 = vsel %vm430, %v371, -inf
        %v600 = vrot.slane %v599, 4
        %v601 = vmax.f32 %v599, %v600
        %v602 = vrot.slane %v601, 2
        %v603 = vmax.f32 %v601, %v602
        %v604 = vrot.slane %v603, 1
        %v605 = vmax.f32 %v603, %v604
        %v606 = vsel %vm430, %v379, -inf
        %v607 = vrot.slane %v606, 4
        %v608 = vmax.f32 %v606, %v607
        %v609 = vrot.slane %v608, 2
        %v610 = vmax.f32 %v608, %v609
        %v611 = vrot.slane %v610, 1
        %v612 = vmax.f32 %v610, %v611
        %v613 = vsel %vm430, %v378, -inf
        %v614 = vrot.slane %v613, 4
        %v615 = vmax.f32 %v613, %v614
        %v616 = vrot.slane %v615, 2
        %v617 = vmax.f32 %v615, %v616
        %v618 = vrot.slane %v617, 1
        %v619 = vmax.f32 %v617, %v618
        %v620 = vsel %vm430, %v380, -inf
        %v621 = vrot.slane %v620, 4
        %v622 = vmax.f32 %v620, %v621
        %v623 = vrot.slane %v622, 2
        %v624 = vmax.f32 %v622, %v623
        %v625 = vrot.slane %v624, 1
        %v626 = vmax.f32 %v624, %v625
        %v627 = vsel %vm430, %v388, -inf
        %v628 = vrot.slane %v627, 4
        %v629 = vmax.f32 %v627, %v628
        %v630 = vrot.slane %v629, 2
        %v631 = vmax.f32 %v629, %v630
        %v632 = vrot.slane %v631, 1
        %v633 = vmax.f32 %v631, %v632
        %v634 = vsel %vm430, %v396, -inf
        %v635 = vrot.slane %v634, 4
        %v636 = vmax.f32 %v634, %v635
        %v637 = vrot.slane %v636, 2
        %v638 = vmax.f32 %v636, %v637
        %v639 = vrot.slane %v638, 1
        %v640 = vmax.f32 %v638, %v639
        %v641 = vsel %vm430, %v395, -inf
        %v642 = vrot.slane %v641, 4
        %v643 = vmax.f32 %v641, %v642
        %v644 = vrot.slane %v643, 2
        %v645 = vmax.f32 %v643, %v644
        %v646 = vrot.slane %v645, 1
        %v647 = vmax.f32 %v645, %v646
        %v648 = vsel %vm430, %v397, -inf
        %v649 = vrot.slane %v648, 4
        %v650 = vmax.f32 %v648, %v649
        %v651 = vrot.slane %v650, 2
        %v652 = vmax.f32 %v650, %v651
        %v653 = vrot.slane %v652, 1
        %v654 = vmax.f32 %v652, %v653
        %vm687 = vcmask 1043459
        %v688 = vsel %vm687, %v444, %v437
        %vm689 = vcmask 1044484
        %v690 = vsel %vm689, %v451, %v688
        %vm691 = vcmask 1045509
        %v692 = vsel %vm691, %v458, %v690
        %vm693 = vcmask 1046534
        %v694 = vsel %vm693, %v465, %v692
        %vm695 = vcmask 1047559
        %v696 = vsel %vm695, %v472, %v694
        %vm697 = vcmask 1041409
        %v698 = vsel %vm697, %v486, %v479
        %vm699 = vcmask 1042434
        %v700 = vsel %vm699, %v493, %v698
        %v701 = vsel %vm687, %v500, %v700
        %v702 = vsel %vm689, %v507, %v701
        %v703 = vsel %vm691, %v514, %v702
        %v704 = vsel %vm693, %v521, %v703
        %v705 = vsel %vm695, %v528, %v704
        %v706 = vsel %vm697, %v542, %v535
        %v707 = vsel %vm699, %v549, %v706
        %v708 = vsel %vm687, %v556, %v707
        %v709 = vsel %vm689, %v563, %v708
        %v710 = vsel %vm691, %v570, %v709
        %v711 = vsel %vm693, %v577, %v710
        %v712 = vsel %vm695, %v584, %v711
        %v713 = vsel %vm697, %v598, %v591
        %v714 = vsel %vm699, %v605, %v713
        %v715 = vsel %vm687, %v612, %v714
        %v716 = vsel %vm689, %v619, %v715
        %v717 = vsel %vm691, %v626, %v716
        %v718 = vsel %vm693, %v633, %v717
        %v719 = vsel %vm695, %v640, %v718
        %v720 = vsel %vm697, %v654, %v647
        %vm726 = vcmask 1041408
        %v727 = vsel %vm726, 0.0, %v696
        %v728 = vsel %vm726, %v720, 0.0
        %v729 = vlaneseq
        %v730 = vshrl.u32 %v729, 7
        %v731 = vadd.s32 %v730, 8
        %v732 = vadd.s32 %v730, 16
        %v733 = vadd.s32 %v730, 24
        %v734 = vadd.s32 %v730, 32
        %v735 = vadd.s32 %v730, 4294967294
        %v736 = vadd.s32 %v731, 4294967294
        %v737 = vadd.s32 %v732, 4294967294
        %v738 = vadd.s32 %v733, 4294967294
        %v739 = vadd.s32 %v734, 4294967294
        %vm740 = vcmp.ge.s32.totalorder %v735, 0
        %vm741 = vcmp.ge.s32.totalorder %v736, 0
        %vm742 = vcmp.ge.s32.totalorder %v737, 0
        %vm743 = vcmp.ge.s32.totalorder %v738, 0
        %vm744 = vcmp.ge.s32.totalorder %v739, 0
        %vm745 = vcmp.lt.s32.totalorder %v735, 32
        %vm746 = vcmp.lt.s32.totalorder %v736, 32
        %vm747 = vcmp.lt.s32.totalorder %v737, 32
        %vm748 = vcmp.lt.s32.totalorder %v738, 32
        %vm749 = vcmp.lt.s32.totalorder %v739, 32
        %vm750 = vmand %vm740, %vm745
        %vm751 = vmand %vm741, %vm746
        %vm752 = vmand %vm742, %vm747
        %vm753 = vmand %vm743, %vm748
        %vm754 = vmand %vm744, %vm749
        %v755 = vsel %vm750, 1, 0
        %v756 = vsel %vm751, 1, 0
        %v757 = vsel %vm752, 1, 0
        %v758 = vsel %vm753, 1, 0
        %v759 = vsel %vm754, 1, 0
        %vm760 = vcmp.eq.s32.totalorder %v755, 1
        %vm761 = vcmp.eq.s32.totalorder %v756, 1
        %vm762 = vcmp.eq.s32.totalorder %v757, 1
        %vm763 = vcmp.eq.s32.totalorder %v758, 1
        %vm764 = vcmp.eq.s32.totalorder %v759, 1
        %v765 = vsel %vm760, %v727, 0.0
        %v766 = vsel %vm761, %v705, 0.0
        %v767 = vsel %vm762, %v712, 0.0
        %v768 = vsel %vm763, %v719, 0.0
        %v769 = vsel %vm764, %v728, 0.0
        %v770 = vpack.c.bf16 %v766, %v765
        %v771 = vpack.c.bf16 %v768, %v767
        %v772 = vpack.c.bf16 %v769, %v769
        %vm773 = vsmask.f32 7424
        %v775 = vshrl.u32 %v770, 16
        %v777 = vshll.u32 %v770, 16
        %v779 = vrot.slane %v777, 1
        %v780 = vor.u32 %v775, %v779
        %v782 = vshll.u32 %v771, 16
        %v784 = vrot.slane %v782, 1
        %v785 = vsel %vm773, %v780, %v784
        %v786 = vshrl.u32 %v771, 16
        %v788 = vor.u32 %v786, %v784
        %v790 = vshll.u32 %v772, 16
        %v792 = vrot.slane %v790, 1
        %v793 = vsel %vm773, %v788, %v792
        %v794 = vshrl.u32 %v772, 16
        %v796 = vor.u32 %v794, %v792
        %797 = vrot.lane.b32.xlu0 %v785, 4
        %v798 = vpop.permute.xlu0 %797
        %799 = vrot.lane.b32.xlu0 %v793, 4
        %v800 = vpop.permute.xlu0 %799
        %801 = vrot.lane.b32.xlu0 %v796, 4
        %v802 = vpop.permute.xlu0 %801
        %vm806 = vcmask 1046528
        %v807 = vrot.slane %v770, 1
        %v808 = vrot.slane %v771, 1
        %v809 = vsel %vm806, %v807, %v808
        %v810 = vrot.slane %v772, 1
        %v811 = vsel %vm806, %v808, %v810
        %812 = vrot.lane.b32.xlu0 %v809, 8
        %v813 = vpop.permute.xlu0 %812
        %814 = vrot.lane.b32.xlu0 %v811, 8
        %v815 = vpop.permute.xlu0 %814
        %816 = vrot.lane.b32.xlu0 %v810, 8
        %v817 = vpop.permute.xlu0 %816
        %vm818 = vcmask 31744
        %v820 = vsel %vm818, %v770, %v798
        %v822 = vsel %vm818, %v771, %v800
        %v824 = vsel %vm818, %v772, %v802
        %vm825 = vcmask 64512
        %v827 = vsel %vm825, %v820, %v813
        %v829 = vsel %vm825, %v822, %v815
        %v831 = vsel %vm825, %v824, %v817
        %v832 = vld [vmem:[%s1] sm:$0xf]
        %v833 = vld [vmem:[%s1 + $0x4] sm:$0x3]
        %v834 = vld [vmem:[%s3] sm:$0x1]
        %v836 = vlaneseq
        %v837 = vshrl.u32 %v836, 7
        %v838 = vsub.s32 0, %v837
        %v839 = vrot.slane %v834, %v838
        %v843 = vunpack.c.l.b16 %v832
        %v844 = vunpack.c.l.b16 %v833
        %v845 = vpack.c.b16 %v844, %v843
        %vm846 = vcmask 97280
        %v847 = vsel %vm846, %v827, 0
        %v849 = vsel %vm846, %v829, 0
        %v851 = vsel %vm846, %v831, 0
        %vm853 = vcmask 1045504
        %v855 = vsel %vm853, %v845, 0
        %857 = vmatprep.subr.bf16.mxu0 0
        %858 = vmatpush1.bf16.msra.mxu0 0
        %859 = vmatprep.subr.bf16.mxu0 0
        %860 = vmatpush1.bf16.msra.mxu0 0
        %861 = vmatprep.subr.bf16.mxu0 0
        %862 = vmatpush1.bf16.msra.mxu0 0
        %863 = vmatprep.subr.bf16.mxu0 0
        %864 = vmatpush1.bf16.msra.mxu0 0
        %865 = vmatprep.subr.bf16.mxu0 0
        %866 = vmatpush1.bf16.msra.mxu0 0
        %867 = vmatprep.subr.bf16.mxu0 0
        %868 = vmatpush1.bf16.msra.mxu0 0
        %869 = vmatprep.subr.bf16.mxu0 0
        %870 = vmatpush1.bf16.msra.mxu0 0
        %871 = vmatprep.subr.bf16.mxu0 0
        %872 = vmatpush1.bf16.msra.mxu0 %v855
        %873 = vmatprep.subr.bf16.mxu0 0
        %874 = vmatpush2.bf16.msra.mxu0 0
        %875 = vmatprep.subr.bf16.mxu0 0
        %876 = vmatpush2.bf16.msra.mxu0 0
        %877 = vmatprep.subr.bf16.mxu0 0
        %878 = vmatpush2.bf16.msra.mxu0 0
        %879 = vmatprep.subr.bf16.mxu0 0
        %880 = vmatpush2.bf16.msra.mxu0 0
        %881 = vmatprep.subr.bf16.mxu0 0
        %882 = vmatpush2.bf16.msra.mxu0 0
        %883 = vmatprep.subr.bf16.mxu0 0
        %884 = vmatpush2.bf16.msra.mxu0 0
        %885 = vmatprep.subr.bf16.mxu0 0
        %886 = vmatpush2.bf16.msra.mxu0 0
        %887 = vmatprep.subr.bf16.mxu0 0
        %888 = vmatpush2.bf16.msra.mxu0 0
        %889 = vmatprep.mubr.bf16.mxu0 0
        %890 = vmatmul.mubr.bf16.gmra.mxu0 %v847
        %v891 = vpop.f32.mrf.mxu0
        %v892 = vadd.f32 %v839, %v891
        %v893 = vpop.f32.mrf.mxu0
        %v894 = vpop.f32.mrf.mxu0
        %v895 = vadd.f32 %v839, %v894
        %v896 = vpop.f32.mrf.mxu0
        %897 = vmatprep.mubr.bf16.mxu0 0
        %898 = vmatmul.mubr.bf16.gmra.mxu0 %v849
        %v899 = vpop.f32.mrf.mxu0
        %v900 = vadd.f32 %v839, %v899
        %v901 = vpop.f32.mrf.mxu0
        %v902 = vpop.f32.mrf.mxu0
        %v903 = vadd.f32 %v839, %v902
        %v904 = vpop.f32.mrf.mxu0
        %905 = vmatprep.mubr.bf16.mxu0 0
        %906 = vmatmul.mubr.bf16.gmra.mxu0 %v851
        %v907 = vpop.f32.mrf.mxu0
        %v908 = vadd.f32 %v839, %v907
        %v909 = vpop.f32.mrf.mxu0
        %v910 = vpop.f32.mrf.mxu0
        %v911 = vpop.f32.mrf.mxu0
        %912 = vdwg.mxu0
        %v913 = vmax.f32 %v892, 0.0
        %v914 = vmax.f32 %v895, 0.0
        %v915 = vmax.f32 %v900, 0.0
        %v916 = vmax.f32 %v903, 0.0
        %v917 = vmax.f32 %v908, 0.0
        %v918 = vadd.s32 %v730, 4294967295
        %v919 = vadd.s32 %v731, 4294967295
        %v920 = vadd.s32 %v732, 4294967295
        %v921 = vadd.s32 %v733, 4294967295
        %v922 = vadd.s32 %v734, 4294967295
        %vm923 = vcmp.ge.s32.totalorder %v918, 0
        %vm924 = vcmp.ge.s32.totalorder %v919, 0
        %vm925 = vcmp.ge.s32.totalorder %v920, 0
        %vm926 = vcmp.ge.s32.totalorder %v921, 0
        %vm927 = vcmp.ge.s32.totalorder %v922, 0
        %vm928 = vcmp.lt.s32.totalorder %v918, 32
        %vm929 = vcmp.lt.s32.totalorder %v919, 32
        %vm930 = vcmp.lt.s32.totalorder %v920, 32
        %vm931 = vcmp.lt.s32.totalorder %v921, 32
        %vm932 = vcmp.lt.s32.totalorder %v922, 32
        %vm933 = vmand %vm923, %vm928
        %vm934 = vmand %vm924, %vm929
        %vm935 = vmand %vm925, %vm930
        %vm936 = vmand %vm926, %vm931
        %vm937 = vmand %vm927, %vm932
        %v938 = vsel %vm933, 1, 0
        %v939 = vsel %vm934, 1, 0
        %v940 = vsel %vm935, 1, 0
        %v941 = vsel %vm936, 1, 0
        %v942 = vsel %vm937, 1, 0
        %vm943 = vcmp.eq.s32.totalorder %v938, 1
        %vm944 = vcmp.eq.s32.totalorder %v939, 1
        %vm945 = vcmp.eq.s32.totalorder %v940, 1
        %vm946 = vcmp.eq.s32.totalorder %v941, 1
        %vm947 = vcmp.eq.s32.totalorder %v942, 1
        %v948 = vsel %vm943, %v913, 0.0
        %v949 = vsel %vm944, %v914, 0.0
        %v950 = vsel %vm945, %v915, 0.0
        %v951 = vsel %vm946, %v916, 0.0
        %v952 = vsel %vm947, %v917, 0.0
        %v953 = vpack.c.bf16 %v949, %v948
        %v954 = vpack.c.bf16 %v951, %v950
        %v955 = vpack.c.bf16 %v952, %v952
        %v957 = vshrl.u32 %v953, 16
        %v959 = vshll.u32 %v953, 16
        %v961 = vrot.slane %v959, 1
        %v962 = vor.u32 %v957, %v961
        %v964 = vshll.u32 %v954, 16
        %v966 = vrot.slane %v964, 1
        %v967 = vsel %vm773, %v962, %v966
        %v968 = vshrl.u32 %v954, 16
        %v970 = vor.u32 %v968, %v966
        %v972 = vshll.u32 %v955, 16
        %v974 = vrot.slane %v972, 1
        %v975 = vsel %vm773, %v970, %v974
        %976 = vrot.lane.b32.xlu0 %v967, 8
        %v977 = vpop.permute.xlu0 %976
        %978 = vrot.lane.b32.xlu0 %v975, 8
        %v979 = vpop.permute.xlu0 %978
        %v983 = vrot.slane %v953, 1
        %v984 = vrot.slane %v954, 1
        %v985 = vsel %vm806, %v983, %v984
        %v986 = vrot.slane %v955, 1
        %v987 = vsel %vm806, %v984, %v986
        %988 = vrot.lane.b32.xlu0 %v985, 16
        %v989 = vpop.permute.xlu0 %988
        %990 = vrot.lane.b32.xlu0 %v987, 16
        %v991 = vpop.permute.xlu0 %990
        %v993 = vsel %vm825, %v953, %v977
        %v995 = vsel %vm825, %v954, %v979
        %vm996 = vcmask 130048
        %v998 = vsel %vm996, %v993, %v989
        %v1000 = vsel %vm996, %v995, %v991
        %v1001 = vld [vmem:[%s2] sm:$0xf]
        %v1002 = vld [vmem:[%s2 + $0x4] sm:$0xf]
        %v1003 = vld [vmem:[%s2 + $0x8] sm:$0xf]
        %v1004 = vld [vmem:[%s4] sm:$0x1]
        %v1006 = vlaneseq
        %v1007 = vshrl.u32 %v1006, 7
        %v1008 = vsub.s32 0, %v1007
        %v1009 = vrot.slane %v1004, %v1008
        %v1014 = vunpack.c.l.b16 %v1001
        %v1015 = vunpack.c.l.b16 %v1002
        %v1016 = vunpack.c.l.b16 %v1003
        %v1017 = vpack.c.b16 %v1015, %v1014
        %v1018 = vpack.c.b16 %v1016, %v1016
        %vm1020 = vcmask 195584
        %v1021 = vsel %vm1020, %v998, 0
        %v1023 = vsel %vm1020, %v1000, 0
        %vm1025 = vcmask 1043456
        %v1027 = vsel %vm1025, %v1018, 0
        %1029 = vmatprep.subr.bf16.mxu0 0
        %1030 = vmatpush1.bf16.msra.mxu0 0
        %1031 = vmatprep.subr.bf16.mxu0 0
        %1032 = vmatpush1.bf16.msra.mxu0 0
        %1033 = vmatprep.subr.bf16.mxu0 0
        %1034 = vmatpush1.bf16.msra.mxu0 0
        %1035 = vmatprep.subr.bf16.mxu0 0
        %1036 = vmatpush1.bf16.msra.mxu0 0
        %1037 = vmatprep.subr.bf16.mxu0 0
        %1038 = vmatpush1.bf16.msra.mxu0 0
        %1039 = vmatprep.subr.bf16.mxu0 0
        %1040 = vmatpush1.bf16.msra.mxu0 0
        %1041 = vmatprep.subr.bf16.mxu0 0
        %1042 = vmatpush1.bf16.msra.mxu0 %v1027
        %1043 = vmatprep.subr.bf16.mxu0 0
        %1044 = vmatpush1.bf16.msra.mxu0 %v1017
        %1045 = vmatprep.subr.bf16.mxu0 0
        %1046 = vmatpush2.bf16.msra.mxu0 0
        %1047 = vmatprep.subr.bf16.mxu0 0
        %1048 = vmatpush2.bf16.msra.mxu0 0
        %1049 = vmatprep.subr.bf16.mxu0 0
        %1050 = vmatpush2.bf16.msra.mxu0 0
        %1051 = vmatprep.subr.bf16.mxu0 0
        %1052 = vmatpush2.bf16.msra.mxu0 0
        %1053 = vmatprep.subr.bf16.mxu0 0
        %1054 = vmatpush2.bf16.msra.mxu0 0
        %1055 = vmatprep.subr.bf16.mxu0 0
        %1056 = vmatpush2.bf16.msra.mxu0 0
        %1057 = vmatprep.subr.bf16.mxu0 0
        %1058 = vmatpush2.bf16.msra.mxu0 0
        %1059 = vmatprep.subr.bf16.mxu0 0
        %1060 = vmatpush2.bf16.msra.mxu0 0
        %1061 = vmatprep.mubr.bf16.mxu0 0
        %1062 = vmatmul.mubr.bf16.gmra.mxu0 %v1021
        %v1063 = vpop.f32.mrf.mxu0
        %v1064 = vadd.f32 %v1009, %v1063
        %v1065 = vpop.f32.mrf.mxu0
        %v1066 = vpop.f32.mrf.mxu0
        %v1067 = vadd.f32 %v1009, %v1066
        %v1068 = vpop.f32.mrf.mxu0
        %1069 = vmatprep.mubr.bf16.mxu0 0
        %1070 = vmatmul.mubr.bf16.gmra.mxu0 %v1023
        %v1071 = vpop.f32.mrf.mxu0
        %v1072 = vadd.f32 %v1009, %v1071
        %v1073 = vpop.f32.mrf.mxu0
        %v1074 = vpop.f32.mrf.mxu0
        %v1075 = vadd.f32 %v1009, %v1074
        %v1076 = vpop.f32.mrf.mxu0
        %1077 = vdwg.mxu0
        %v1078 = vmax.f32 %v1064, 0.0
        %v1079 = vmax.f32 %v1067, 0.0
        %v1080 = vmax.f32 %v1072, 0.0
        %v1081 = vmax.f32 %v1075, 0.0
        %1082 = vxpose.xlu0.b32.start [1/16] %v1078, 128
        %1083 = vxpose.xlu0.b32.cont [2/16] %v1079, 128
        %1084 = vxpose.xlu0.b32.cont [3/16] %v1080, 128
        %1085 = vxpose.xlu0.b32.cont [4/16] %v1081, 128
        %1086 = vxpose.xlu0.b32.cont [5/16] 0.0, 128
        %1087 = vxpose.xlu0.b32.cont [6/16] 0.0, 128
        %1088 = vxpose.xlu0.b32.cont [7/16] 0.0, 128
        %1089 = vxpose.xlu0.b32.cont [8/16] 0.0, 128
        %1090 = vxpose.xlu0.b32.cont [9/16] 0.0, 128
        %1091 = vxpose.xlu0.b32.cont [10/16] 0.0, 128
        %1092 = vxpose.xlu0.b32.cont [11/16] 0.0, 128
        %1093 = vxpose.xlu0.b32.cont [12/16] 0.0, 128
        %1094 = vxpose.xlu0.b32.cont [13/16] 0.0, 128
        %1095 = vxpose.xlu0.b32.cont [14/16] 0.0, 128
        %1096 = vxpose.xlu0.b32.cont [15/16] 0.0, 128
        %1097 = vxpose.xlu0.b32.end [16/16] 0.0, 128
        %v1098 = vpop.trf.xlu0
        %v1099 = vpop.trf.xlu0
        %v1100 = vpop.trf.xlu0
        %v1101 = vpop.trf.xlu0
        %v1102 = vpop.trf.xlu0
        %v1103 = vpop.trf.xlu0
        %v1104 = vpop.trf.xlu0
        %v1105 = vpop.trf.xlu0
        %v1106 = vpop.trf.xlu0
        %v1107 = vpop.trf.xlu0
        %v1108 = vpop.trf.xlu0
        %v1109 = vpop.trf.xlu0
        %v1110 = vpop.trf.xlu0
        %v1111 = vpop.trf.xlu0
        %v1112 = vpop.trf.xlu0
        %v1113 = vpop.trf.xlu0
        %vm1114 = vcmask 261120
        %1115 = vst.msk [vmem:[%s215] sm:$0xff] %vm1114, %v1098
        %s1116 = sand.u32 %s137, 1
        %s1117 = scalar_lea.sflag [#allocation3], %s1116
        %s1118 = sand.u32 %s137, 1
        %s1119 = smul.addr %s1118, 8
        %s1120 = scalar_lea.vmem [#allocation2], %s1119
        // Predicated region
        $region41: #{down_forward.1} parent=39 // pred_check
          %p1121 = pneg %p147
        $region42: #{down_forward.1} parent=39 // pred_check_branch
          %1123 = sbr.rel (%p1121) target = $region44
        $region43: #{down_forward.1} parent=39 // pred_region
          %s1125 = ssub.s32 128, 128
          %1126 = vsyncadd %s1117, %s1125
          %s1127 = smul.addr %s19, 128
          %s1128 = scalar_lea.hbm %s5, %s1127
          %s1130 = sshll.u32 %s1120, 4
          %s1131 = int_to_ptr.vmem [resolvable:$true] %s1130
          %1133 = dma.vmem_to_hbm [thread:$0]  %s1131, 128, %s1128, %s1117
        $region44: #{down_forward.1} parent=39 // pred_fallthru
          _
      $region40: #{down_forward.1} parent=5 // pred_fallthru
        _
      %p1134 = scmp.le.s32.totalorder 2, %s14
      // Predicated region
      $region45: #{down_forward.1} parent=5 // pred_check
        %p1135 = pneg %p1134
      $region46: #{down_forward.1} parent=5 // pred_check_branch
        %1137 = sbr.rel (%p1135) target = $region48
      $region47: #{down_forward.1} parent=5 // pred_region
        %s1138 = ssub.s32 %s14, 2
        // Predicated region
        $region49: #{down_forward.1} parent=47 // pred_check
          %p1139 = pneg %p153
        $region50: #{down_forward.1} parent=47 // pred_check_branch
          %1141 = sbr.rel (%p1139) target = $region52
        $region51: #{down_forward.1} parent=47 // pred_region
          %s1142 = sand.u32 %s138, 1
          %s1143 = scalar_lea.sflag [#allocation3], %s1142
          %s1144 = sand.u32 %s138, 1
          %s1145 = smul.addr %s1144, 8
          %s1146 = scalar_lea.vmem [#allocation2], %s1145
          %1147 = dma.done %s1143, 128
        $region52: #{down_forward.1} parent=47 // pred_fallthru
          _
      $region48: #{down_forward.1} parent=5 // pred_fallthru
        _
    $region6: #{down_forward.1} parent=1 // loop_footer
      %s18 = sadd.s32 1, %s14
    $region7: #{down_forward.1} parent=1 // loop_footer_branch
      %13 = sbr.rel target = $region3
    $region8: #{down_forward.1} parent=1 // loop_exit
      _
    %1148 = vsyncpa [#allocation3], 1
    %s1149 = scalar_lea.sflag [#allocation3], 1
    %1150 = vsyncpa %s1149, 1

</llo_original>
